<compile_context>
chip_gen: v7x
topology: tpu7x:2x2x1
jax: 0.10.0
libtpu: 0.0.40
codegen_flags: <defaults>
</compile_context>

<pallas_src>
import functools
import math

import jax
import jax.numpy as jnp
from jax import lax
from jax.experimental import pallas as pl
from jax.experimental.pallas import tpu as pltpu

LANES = 128
# Total VMEM budget for the two double-buffered input streams.
TARGET_INPUT_VMEM_BYTES = 16 * 1024 * 1024
VMEM_LIMIT_BYTES = 32 * 1024 * 1024


def _sublane_pack(dtype):
    # Sublane packing requirement: f32 -> 8, bf16/f16 -> 16, int8/fp8 -> 32.
    return max(8, 32 // jnp.dtype(dtype).itemsize)


def _tile_partial(x, tile_rows):
    """Reduce a (tile_rows, 128) f32 tile to an (8, 128) partial sum.

    Two-stage reduce when possible so the VALU sees 64x128 independent
    accumulation chains instead of one serial chain per lane position.
    """
    if tile_rows > 64 and tile_rows % 64 == 0:
        x = x.reshape(tile_rows // 64, 64, LANES).sum(axis=0)   # (64, 128)
        x = x.reshape(8, 8, LANES).sum(axis=0)                  # (8, 128)
    elif tile_rows > 8:
        x = x.reshape(tile_rows // 8, 8, LANES).sum(axis=0)
    return x.reshape(8, LANES)


def _wmae_kernel(preds_ref, gts_ref, out_ref, *, log_w, tile_rows, rows,
                 need_mask):
    """Emit one (8,128) partial sum of |p-g| * exp(g*log_w) per grid block."""
    p = preds_ref[...].astype(jnp.float32)
    g = gts_ref[...].astype(jnp.float32)
    # weight ** g == exp(g * log(weight))   (weight > 0, asserted in wrapper)
    contrib = jnp.abs(p - g) * jnp.exp(g * log_w)

    if need_mask:
        i = pl.program_id(0)
        last = pl.num_programs(0) - 1

        @pl.when(i != last)
        def _full():
            out_ref[...] = _tile_partial(contrib, tile_rows)[None]

        @pl.when(i == last)
        def _masked():
            # Out-of-bounds garbage past `rows` occupies whole rows, so a
            # row-index compare suffices (the alignment pad itself is zeros
            # and already contributes exactly 0).
            row = lax.broadcasted_iota(jnp.int32, (tile_rows, LANES), 0)
            valid = (i * tile_rows + row) < rows
            out_ref[...] = _tile_partial(
                jnp.where(valid, contrib, 0.0), tile_rows)[None]
    else:
        out_ref[...] = _tile_partial(contrib, tile_rows)[None]


def weighted_mae(preds, gts, weight):
    """Pallas implementation of weighted MAE. Returns a scalar float32."""
    assert preds.shape == gts.shape
    assert weight > 0, "weighted_mae: weight must be > 0 (pow implemented as exp/log)"
    n_elems = preds.size

    # Flatten (free for contiguous NCHW); keep native dtype (cast in-kernel).
    p_flat = preds.reshape(-1)
    g_flat = gts.reshape(-1)

    sub = max(_sublane_pack(preds.dtype), _sublane_pack(gts.dtype))
    align = sub * LANES
    padded = ((n_elems + align - 1) // align) * align
    pad = padded - n_elems
    if pad:
        # Tiny alignment pad only when needed; zero pad contributes exactly 0
        # to the sum (|0-0| * weight**0 == 0).
        p_flat = jnp.pad(p_flat, (0, pad))
        g_flat = jnp.pad(g_flat, (0, pad))

    rows = padded // LANES                      # multiple of `sub` (>= 8)
    p2d = p_flat.reshape(rows, LANES)
    g2d = g_flat.reshape(rows, LANES)

    # Size the tile in bytes so per-step HBM traffic is constant across dtypes.
    bytes_per_row = LANES * (jnp.dtype(preds.dtype).itemsize
                             + jnp.dtype(gts.dtype).itemsize)
    target_rows = TARGET_INPUT_VMEM_BYTES // (2 * bytes_per_row)  # 2x: dbl-buffer
    target_rows = max(64, (target_rows // 64) * 64)               # 64-row multiple
    tile_rows = min(target_rows, rows)          # stays a multiple of 8

    num_blocks = pl.cdiv(rows, tile_rows)
    need_mask = (rows % tile_rows) != 0

    kernel = functools.partial(
        _wmae_kernel,
        log_w=math.log(float(weight)),
        tile_rows=tile_rows,
        rows=rows,
        need_mask=need_mask,
    )

    partials = pl.pallas_call(
        kernel,
        out_shape=jax.ShapeDtypeStruct((num_blocks, 8, LANES), jnp.float32),
        grid_spec=pltpu.PrefetchScalarGridSpec(
            num_scalar_prefetch=0,
            grid=(num_blocks,),
            in_specs=[
                pl.BlockSpec((tile_rows, LANES), lambda i: (i, 0)),
                pl.BlockSpec((tile_rows, LANES), lambda i: (i, 0)),
            ],
            out_specs=pl.BlockSpec((1, 8, LANES), lambda i: (i, 0, 0)),
        ),
        compiler_params=pltpu.CompilerParams(
            dimension_semantics=("parallel",),
            vmem_limit_bytes=VMEM_LIMIT_BYTES,
        ),
        cost_estimate=pl.CostEstimate(
            flops=5 * n_elems,
            transcendentals=n_elems,
            bytes_accessed=rows * bytes_per_row + num_blocks * 8 * LANES * 4,
        ),
    )(p2d, g2d)

    # Tiny final reduce (a few KiB) in XLA; doing it here (not in-kernel) is
    # what lets the grid axis be 'parallel' for the v7x dual-TC split.
    return jnp.sum(partials) * (1.0 / float(n_elems))


def weighted_mae_ref(preds, gts, weight):
    return jnp.mean(
        jnp.abs(preds.astype(jnp.float32) - gts.astype(jnp.float32))
        * jnp.power(jnp.float32(weight), gts.astype(jnp.float32))
    )


if __name__ == "__main__":
    # Deterministic "config": weighted_mae_weight
    WEIGHT = 1.1

    key = jax.random.PRNGKey(0)
    k1, k2 = jax.random.split(key)
    # NCHW inputs, small shapes
    preds = jax.random.normal(k1, (2, 4, 16, 16), dtype=jnp.float32)
    gts = jax.random.normal(k2, (2, 4, 16, 16), dtype=jnp.float32)

    loss = weighted_mae(preds, gts, WEIGHT)
    loss = jax.block_until_ready(loss)

    ref = weighted_mae_ref(preds, gts, WEIGHT)
    assert jnp.allclose(loss, ref, rtol=1e-5, atol=1e-6), (loss, ref)

    print("KERNEL_OK")
</pallas_src>

<mosaic_0001>
module attributes {stable_mosaic.version = 11 : i64} {
  func.func @_wmae_kernel(%arg0: i32, %arg1: memref<16x128xf32, #tpu.memory_space<vmem>>, %arg2: memref<16x128xf32, #tpu.memory_space<vmem>>, %arg3: memref<1x8x128xf32, #tpu.memory_space<vmem>>) attributes {dimension_semantics = [#tpu.dimension_semantics<parallel>], iteration_bounds = array<i64: 1>, scalar_prefetch = 0 : i64, scratch_operands = 0 : i64, tpu.core_type = #tpu.core_type<tc>, window_params = [{transform_indices = @transform_0, window_bounds = array<i64: 16, 128>}, {transform_indices = @transform_1, window_bounds = array<i64: 16, 128>}, {transform_indices = @transform_2, window_bounds = array<i64: 1, 8, 128>}]} {
    %c0 = arith.constant 0 : index
    %c0_0 = arith.constant 0 : index
    %0 = vector.load %arg1[%c0, %c0_0] : memref<16x128xf32, #tpu.memory_space<vmem>>, vector<16x128xf32>
    %c0_1 = arith.constant 0 : index
    %c0_2 = arith.constant 0 : index
    %1 = vector.load %arg2[%c0_1, %c0_2] : memref<16x128xf32, #tpu.memory_space<vmem>>, vector<16x128xf32>
    %2 = arith.subf %0, %1 : vector<16x128xf32>
    %3 = math.absf %2 : vector<16x128xf32>
    %cst = arith.constant 0.0953101813 : f32
    %4 = vector.broadcast %cst : f32 to vector<16x128xf32>
    %5 = arith.mulf %1, %4 : vector<16x128xf32>
    %6 = math.exp %5 : vector<16x128xf32>
    %7 = arith.mulf %3, %6 : vector<16x128xf32>
    %8 = vector.shape_cast %7 : vector<16x128xf32> to vector<2x8x128xf32>
    %cst_3 = arith.constant dense<0.000000e+00> : vector<8x128xf32>
    %9 = vector.multi_reduction <add>, %8, %cst_3 [0] : vector<2x8x128xf32> to vector<8x128xf32>
    %10 = vector.shape_cast %9 : vector<8x128xf32> to vector<1x8x128xf32>
    %c0_4 = arith.constant 0 : index
    %c0_5 = arith.constant 0 : index
    %c0_6 = arith.constant 0 : index
    %11 = vector.load %arg3[%c0_4, %c0_5, %c0_6] : memref<1x8x128xf32, #tpu.memory_space<vmem>>, vector<1x8x128xf32>
    tpu.vector_store %arg3[%c0_4, %c0_5, %c0_6], %10 {strides = array<i32>} : memref<1x8x128xf32, #tpu.memory_space<vmem>>, vector<1x8x128xf32>,
    return
  }
  func.func @transform_0(%arg0: i32) -> (i32, i32) {
    %c0_i32 = arith.constant 0 : i32
    %c0_i32_0 = arith.constant 0 : i32
    return %arg0, %c0_i32 : i32, i32
  }
  func.func @transform_1(%arg0: i32) -> (i32, i32) {
    %c0_i32 = arith.constant 0 : i32
    %c0_i32_0 = arith.constant 0 : i32
    return %arg0, %c0_i32 : i32, i32
  }
  func.func @transform_2(%arg0: i32) -> (i32, i32, i32) {
    %c0_i32 = arith.constant 0 : i32
    %c0_i32_0 = arith.constant 0 : i32
    %c0_i32_1 = arith.constant 0 : i32
    return %arg0, %c0_i32, %c0_i32_0 : i32, i32, i32
  }
}

</mosaic_0001>

<llo_original>
// kernel: tpu_custom_call.1
$region0: #{tpu_custom_call.1}
  #allocation0 [shape = 'u32[]', space=smem, size = 0x4, offset = 0x4, fixed_abs, tag = 'smem constant byte address 0x4 - core index']
  #allocation1 [shape = 'u32[144,128]{1,0:T(1,128)}', space=vmem, size = 0x12000, scoped, tag = 'internal scratch']
  %s0 = inlined_call_operand.hbm [shape: f32[16,128], index: 0, kind: input, shape index: {}]
  %s1 = inlined_call_operand.hbm [shape: f32[16,128], index: 1, kind: input, shape index: {}]
  %s2 = inlined_call_operand.hbm [shape: f32[1,8,128], index: 2, kind: output, shape index: {}]
  %s3 = sld [smem:[#allocation0]]
  $region26: #{tpu_custom_call.1} parent=0
    _
  %s5 = ssub.s32 1, %s3
  %s6 = scalar_select 0, %s5, %s3
  $region1: #{tpu_custom_call.1} parent=0
    #allocation2 [shape = 'u8[8192]{0}', space=vmem, size = 0x2000, scoped, tag = 'input window, operand 0, single buffered']
    #allocation3 [shape = 's32[1]{0}', space=sflag, size = 0x4, scoped, tag = 'scoped memory for tpu_custom_call.1']
    #allocation4 [shape = 's32[1]{0}', space=sflag, size = 0x4, scoped, tag = 'scoped memory for tpu_custom_call.1']
    #allocation5 [shape = 'u8[8192]{0}', space=vmem, size = 0x2000, scoped, tag = 'input window, operand 1, single buffered']
    #allocation6 [shape = 's32[1]{0}', space=sflag, size = 0x4, scoped, tag = 'scoped memory for tpu_custom_call.1']
    #allocation7 [shape = 'u8[4096]{0}', space=vmem, size = 0x1000, scoped, tag = 'output window, operand 0, single buffered']
    %7 = vsyncpa [#allocation3], 0
    %8 = vsyncpa [#allocation6], 0
    %9 = vsyncpa [#allocation4], 0
    // Predicated region
    $region2: #{tpu_custom_call.1} parent=1 // pred_check
      _
    $region3: #{tpu_custom_call.1} parent=1 // pred_check_branch
      %11 = sbr.rel (0) target = $region5
    $region4: #{tpu_custom_call.1} parent=1 // pred_region
      %s13 = ssub.s32 256, 256
      %14 = vsyncadd [#allocation3], %s13
      %s15 = sshll.u32 [#allocation2], 4
      %s16 = int_to_ptr.vmem [resolvable:$true] %s15
      %21 = dma.hbm_to_vmem [thread:$0]  %s0, 256, %s16, [#allocation3], 128, 128, 8
    $region5: #{tpu_custom_call.1} parent=1 // pred_fallthru
      _
    // Predicated region
    $region6: #{tpu_custom_call.1} parent=1 // pred_check
      _
    $region7: #{tpu_custom_call.1} parent=1 // pred_check_branch
      %23 = sbr.rel (0) target = $region9
    $region8: #{tpu_custom_call.1} parent=1 // pred_region
      %s25 = ssub.s32 256, 256
      %26 = vsyncadd [#allocation6], %s25
      %s27 = sshll.u32 [#allocation5], 4
      %s28 = int_to_ptr.vmem [resolvable:$true] %s27
      %33 = dma.hbm_to_vmem [thread:$0]  %s1, 256, %s28, [#allocation6], 128, 128, 8
    $region9: #{tpu_custom_call.1} parent=1 // pred_fallthru
      _
    // Predicated region
    $region10: #{tpu_custom_call.1} parent=1 // pred_check
      _
    $region11: #{tpu_custom_call.1} parent=1 // pred_check_branch
      %35 = sbr.rel (0) target = $region13
    $region12: #{tpu_custom_call.1} parent=1 // pred_region
      %36 = dma.done [#allocation3], 256
    $region13: #{tpu_custom_call.1} parent=1 // pred_fallthru
      _
    // Predicated region
    $region14: #{tpu_custom_call.1} parent=1 // pred_check
      _
    $region15: #{tpu_custom_call.1} parent=1 // pred_check_branch
      %38 = sbr.rel (0) target = $region17
    $region16: #{tpu_custom_call.1} parent=1 // pred_region
      %39 = dma.done [#allocation6], 256
    $region17: #{tpu_custom_call.1} parent=1 // pred_fallthru
      _
    %v40 = vld [vmem:[#allocation2] sm:$0xff]
    %v41 = vld [vmem:[#allocation2 + $0x8] sm:$0xff]
    %v42 = vld [vmem:[#allocation5] sm:$0xff]
    %v43 = vld [vmem:[#allocation5 + $0x8] sm:$0xff]
    %v44 = vsub.f32 %v40, %v42
    %v45 = vsub.f32 %v41, %v43
    %v46 = vand.u32 2147483647, %v44
    %v47 = vand.u32 2147483647, %v45
    %v48 = vmul.f32 %v42, 0.09531018
    %v49 = vmul.f32 %v43, 0.09531018
    %v50 = vmul.f32 %v48, 1.442695
    %v51 = vpow.pop %v50
    %v52 = vmul.f32 %v49, 1.442695
    %v53 = vpow.pop %v52
    %v54 = vmul.f32 %v46, %v51
    %v55 = vmul.f32 %v47, %v53
    %v56 = vadd.f32 %v54, %v55
    %57 = vst [vmem:[#allocation7] sm:$0xff] %v56
    // Predicated region
    $region18: #{tpu_custom_call.1} parent=1 // pred_check
      _
    $region19: #{tpu_custom_call.1} parent=1 // pred_check_branch
      %59 = sbr.rel (0) target = $region21
    $region20: #{tpu_custom_call.1} parent=1 // pred_region
      %s61 = ssub.s32 128, 128
      %62 = vsyncadd [#allocation4], %s61
      %s64 = sshll.u32 [#allocation7], 4
      %s65 = int_to_ptr.vmem [resolvable:$true] %s64
      %67 = dma.vmem_to_hbm [thread:$0]  %s65, 128, %s2, [#allocation4]
    $region21: #{tpu_custom_call.1} parent=1 // pred_fallthru
      _
    // Predicated region
    $region22: #{tpu_custom_call.1} parent=1 // pred_check
      _
    $region23: #{tpu_custom_call.1} parent=1 // pred_check_branch
      %69 = sbr.rel (0) target = $region25
    $region24: #{tpu_custom_call.1} parent=1 // pred_region
      %70 = dma.done [#allocation4], 128
    $region25: #{tpu_custom_call.1} parent=1 // pred_fallthru
      _
    %71 = vsyncpa [#allocation3], 1
    %72 = vsyncpa [#allocation6], 1
    %73 = vsyncpa [#allocation4], 1

</llo_original>
